<compile_context>
chip_gen: v6e
topology: v6e:2x2x1
jax: 0.10.0
libtpu: 0.0.40
codegen_flags: <defaults>
</compile_context>

<pallas_src>
import jax
import jax.numpy as jnp
from jax import lax
from jax.experimental import pallas as pl
from jax.experimental.pallas import tpu as pltpu


# ---------------------------- tuning constants ------------------------------
_PER_STEP_BLOCK_BYTES = 4 * 1024 * 1024   # x-block + out-block bytes per grid step
_VMEM_LIMIT_BYTES = 32 * 1024 * 1024      # scoped VMEM (safe on v5e/v6e/v7x)
_MAX_BLOCK_N = 8                          # cap on batch folding (bounds unrolling)
_VPU_CHUNK_ROWS = 64                      # (64,128) f32 chunk = 8 vregs per plane
_MXU_LANE_CHUNK = 2048                    # lanes per in-kernel matmul chunk
_VPU_MAX_CIN_X_COUT = 16                  # tiny-channel threshold for the VPU path


def _round_up(x, m):
    return ((x + m - 1) // m) * m


# ------------------------------- kernels ------------------------------------
def _vpu_chunk(x_ref, w_ref, b_ref, o_ref, r0, ch):
    """One (ch, 128) sublane-dense chunk of the tiny-channel VPU path.

    x_ref: (bn, C_in, BR, 128) VMEM   w_ref: (C_out, C_in) SMEM (scalars)
    o_ref: (bn, C_out, BR, 128) VMEM  b_ref: (C_out,)      SMEM
    """
    bn, c_in = x_ref.shape[0], x_ref.shape[1]
    c_out = o_ref.shape[1]
    for n in range(bn):
        for co in range(c_out):
            # Read one channel plane-chunk at a time: live range stays small
            # (acc + one plane ~ 16 vregs), no spills even with big blocks.
            acc = x_ref[n, 0, pl.ds(r0, ch), :].astype(jnp.float32) * w_ref[co, 0]
            for ci in range(1, c_in):
                acc = acc + (
                    x_ref[n, ci, pl.ds(r0, ch), :].astype(jnp.float32) * w_ref[co, ci]
                )
            acc = acc + b_ref[co]
            # Dense (ch, 128) store -> full sublane utilization.
            o_ref[n, co, pl.ds(r0, ch), :] = acc.astype(o_ref.dtype)


def _outconv_vpu_kernel(x_ref, w_ref, b_ref, o_ref):
    """Tiny-channel path: sublane-dense broadcast FMAs on the VPU."""
    br = x_ref.shape[2]
    ch = min(br, _VPU_CHUNK_ROWS)
    n_chunks = br // ch                 # exact by construction (see wrapper)
    if n_chunks <= 8:
        for c in range(n_chunks):       # short: unroll for LLO visibility
            _vpu_chunk(x_ref, w_ref, b_ref, o_ref, c * ch, ch)
    else:
        def body(c, carry):
            r0 = pl.multiple_of(c * ch, ch)
            _vpu_chunk(x_ref, w_ref, b_ref, o_ref, r0, ch)
            return carry
        lax.fori_loop(0, n_chunks, body, 0)


def _outconv_mxu_kernel(x_ref, w_ref, b_ref, o_ref):
    """General path: lane-chunked (C_out, C_in) @ (C_in, lanes) on the MXU.

    x_ref: (bn, C_in, TS) VMEM   w_ref: (C_out, C_in) VMEM
    o_ref: (bn, C_out, TS) VMEM  b_ref: (C_out, 1)    VMEM
    """
    bn, _, ts = x_ref.shape
    w = w_ref[...]
    b = b_ref[...].astype(jnp.float32)
    lc = min(ts, _MXU_LANE_CHUNK)
    n_chunks = ts // lc                 # exact by construction (see wrapper)
    for n in range(bn):
        for c in range(n_chunks):
            c0 = c * lc
            acc = jnp.dot(
                w, x_ref[n, :, c0:c0 + lc],
                preferred_element_type=jnp.float32,
                precision=jax.lax.Precision.HIGHEST,
            )
            o_ref[n, :, c0:c0 + lc] = (acc + b).astype(o_ref.dtype)


# ------------------------------- wrapper -------------------------------------
def outconv_1x1(x_nchw, weight, bias):
    """1x1 conv (nn.Conv2d(kernel_size=1)) forward.

    x_nchw : (N, C_in, H, W)
    weight : (C_out, C_in, 1, 1)   (PyTorch conv weight layout)
    bias   : (C_out,)
    returns: (N, C_out, H, W)
    """
    N, C_in, H, W = x_nchw.shape
    C_out = weight.shape[0]
    HW = H * W

    w2 = weight.reshape(C_out, C_in)
    itemsize = jnp.dtype(x_nchw.dtype).itemsize
    bytes_per_lane = (C_in + C_out) * itemsize

    use_vpu = (C_in * C_out <= _VPU_MAX_CIN_X_COUT) and (HW % 128 == 0)

    if use_vpu:
        # Sublane-dense layout: spatial -> (rows, 128); free contiguous reshape.
        rows = HW // 128
        rows_budget = max(1, _PER_STEP_BLOCK_BYTES // (bytes_per_lane * 128))
        if rows <= _VPU_CHUNK_ROWS:
            br = rows                                  # full extent, one chunk
        else:
            br = min(rows, rows_budget)
            br = max(_VPU_CHUNK_ROWS, (br // _VPU_CHUNK_ROWS) * _VPU_CHUNK_ROWS)

        per_n_bytes = bytes_per_lane * br * 128
        bn = int(max(1, min(N, _MAX_BLOCK_N,
                            _PER_STEP_BLOCK_BYTES // per_n_bytes)))
        while N % bn:                                  # keep batch blocks full
            bn -= 1

        grid = (pl.cdiv(N, bn), pl.cdiv(rows, br))
        x_in = x_nchw.reshape(N, C_in, rows, 128)
        x_spec = pl.BlockSpec((bn, C_in, br, 128), lambda n, s: (n, 0, s, 0))
        out_spec = pl.BlockSpec((bn, C_out, br, 128), lambda n, s: (n, 0, s, 0))
        # Weights/bias as SMEM scalars (cheap scalar reads, no vreg traffic).
        w_spec = pl.BlockSpec(memory_space=pltpu.MemorySpace.SMEM)
        b_spec = pl.BlockSpec(memory_space=pltpu.MemorySpace.SMEM)
        w_arg = w2.astype(jnp.float32)
        b_arg = bias.astype(jnp.float32)
        kernel = _outconv_vpu_kernel
        out_shape = jax.ShapeDtypeStruct((N, C_out, rows, 128), x_nchw.dtype)
    else:
        # Lane-dense 3-D layout, MXU matmul per lane chunk.
        ts = max(128, min(_PER_STEP_BLOCK_BYTES // bytes_per_lane,
                          _round_up(HW, 128)))
        ts = _round_up(ts, 128)
        if ts > _MXU_LANE_CHUNK:
            ts = (ts // _MXU_LANE_CHUNK) * _MXU_LANE_CHUNK

        per_n_bytes = bytes_per_lane * ts
        bn = int(max(1, min(N, _MAX_BLOCK_N,
                            _PER_STEP_BLOCK_BYTES // per_n_bytes)))
        while N % bn:
            bn -= 1

        grid = (pl.cdiv(N, bn), pl.cdiv(HW, ts))
        x_in = x_nchw.reshape(N, C_in, HW)
        x_spec = pl.BlockSpec((bn, C_in, ts), lambda n, s: (n, 0, s))
        out_spec = pl.BlockSpec((bn, C_out, ts), lambda n, s: (n, 0, s))
        w_spec = pl.BlockSpec((C_out, C_in), lambda n, s: (0, 0))
        b_spec = pl.BlockSpec((C_out, 1), lambda n, s: (0, 0))
        w_arg = w2
        b_arg = bias.astype(jnp.float32).reshape(C_out, 1)
        kernel = _outconv_mxu_kernel
        out_shape = jax.ShapeDtypeStruct((N, C_out, HW), x_nchw.dtype)

    out = pl.pallas_call(
        kernel,
        out_shape=out_shape,
        grid=grid,
        in_specs=[x_spec, w_spec, b_spec],
        out_specs=out_spec,
        compiler_params=pltpu.CompilerParams(
            # No reduction across the grid; both axes can shard across cores.
            dimension_semantics=("parallel", "parallel"),
            vmem_limit_bytes=_VMEM_LIMIT_BYTES,
        ),
    )(x_in, w_arg, b_arg)

    return out.reshape(N, C_out, H, W)


# ------------------------------- reference ----------------------------------
def _ref_conv1x1(x, weight, bias):
    w2 = weight.reshape(weight.shape[0], weight.shape[1])
    y = jnp.einsum("nchw,oc->nohw", x, w2,
                   precision=jax.lax.Precision.HIGHEST)
    return y + bias.reshape(1, -1, 1, 1)


def _make_case(key, n, c_in, c_out, h, w):
    k1, k2, k3 = jax.random.split(key, 3)
    bound = 1.0 / (c_in ** 0.5)   # PyTorch Conv2d default init range
    x = jax.random.normal(k1, (n, c_in, h, w), dtype=jnp.float32)
    weight = jax.random.uniform(k2, (c_out, c_in, 1, 1), dtype=jnp.float32,
                                minval=-bound, maxval=bound)
    bias = jax.random.uniform(k3, (c_out,), dtype=jnp.float32,
                              minval=-bound, maxval=bound)
    return x, weight, bias


if __name__ == "__main__":
    key = jax.random.PRNGKey(0)
    k1, k2, k3 = jax.random.split(key, 3)

    # --- Case 1: the OutConv shape (in=4, out=2) -> sublane-dense VPU path ---
    x, w, b = _make_case(k1, n=2, c_in=4, c_out=2, h=16, w=16)
    y = jax.block_until_ready(outconv_1x1(x, w, b))
    ref = _ref_conv1x1(x, w, b)
    assert y.shape == (2, 2, 16, 16)
    assert jnp.allclose(y, ref, atol=1e-5, rtol=1e-5), \
        float(jnp.max(jnp.abs(y - ref)))

    # --- Case 2: larger channel counts -> MXU path (lane-chunked matmul) -----
    x2, w2_, b2 = _make_case(k2, n=2, c_in=48, c_out=32, h=16, w=16)
    y2 = jax.block_until_ready(outconv_1x1(x2, w2_, b2))
    ref2 = _ref_conv1x1(x2, w2_, b2)
    assert y2.shape == (2, 32, 16, 16)
    assert jnp.allclose(y2, ref2, atol=1e-4, rtol=1e-4), \
        float(jnp.max(jnp.abs(y2 - ref2)))

    # --- Case 3: larger feature map -> big VMEM-budgeted block + chunk loop --
    x3, w3, b3 = _make_case(k3, n=1, c_in=4, c_out=2, h=256, w=512)
    y3 = jax.block_until_ready(outconv_1x1(x3, w3, b3))
    ref3 = _ref_conv1x1(x3, w3, b3)
    assert y3.shape == (1, 2, 256, 512)
    assert jnp.allclose(y3, ref3, atol=1e-5, rtol=1e-5), \
        float(jnp.max(jnp.abs(y3 - ref3)))

    print("KERNEL_OK")
</pallas_src>

<mosaic_0001>
module attributes {stable_mosaic.version = 11 : i64} {
  func.func @_outconv_vpu_kernel(%arg0: i32, %arg1: i32, %arg2: memref<2x4x2x128xf32, #tpu.memory_space<vmem>>, %arg3: memref<2x4xf32, #tpu.memory_space<smem>>, %arg4: memref<2xf32, #tpu.memory_space<smem>>, %arg5: memref<2x2x2x128xf32, #tpu.memory_space<vmem>>) attributes {dimension_semantics = [#tpu.dimension_semantics<parallel>, #tpu.dimension_semantics<parallel>], iteration_bounds = array<i64: 1, 1>, scalar_prefetch = 0 : i64, scratch_operands = 0 : i64, tpu.core_type = #tpu.core_type<tc>, window_params = [{transform_indices = @transform_0, window_bounds = array<i64: 2, 4, 2, 128>}, {transform_indices = @transform_1, window_bounds = array<i64: 2, 4>}, {transform_indices = @transform_2, window_bounds = array<i64: 2>}, {transform_indices = @transform_3, window_bounds = array<i64: 2, 2, 2, 128>}]} {
    %c0 = arith.constant 0 : index
    %c0_0 = arith.constant 0 : index
    %c0_1 = arith.constant 0 : index
    %c0_2 = arith.constant 0 : index
    %0 = vector.load %arg2[%c0, %c0_0, %c0_1, %c0_2] : memref<2x4x2x128xf32, #tpu.memory_space<vmem>>, vector<1x1x2x128xf32>
    %1 = vector.shape_cast %0 : vector<1x1x2x128xf32> to vector<2x128xf32>
    %c0_3 = arith.constant 0 : index
    %c0_4 = arith.constant 0 : index
    %2 = memref.load %arg3[%c0_3, %c0_4] : memref<2x4xf32, #tpu.memory_space<smem>>
    %3 = vector.broadcast %2 : f32 to vector<2x128xf32>
    %4 = arith.mulf %1, %3 : vector<2x128xf32>
    %c0_5 = arith.constant 0 : index
    %c1 = arith.constant 1 : index
    %c0_6 = arith.constant 0 : index
    %c0_7 = arith.constant 0 : index
    %5 = vector.load %arg2[%c0_5, %c1, %c0_6, %c0_7] : memref<2x4x2x128xf32, #tpu.memory_space<vmem>>, vector<1x1x2x128xf32>
    %6 = vector.shape_cast %5 : vector<1x1x2x128xf32> to vector<2x128xf32>
    %c0_8 = arith.constant 0 : index
    %c1_9 = arith.constant 1 : index
    %7 = memref.load %arg3[%c0_8, %c1_9] : memref<2x4xf32, #tpu.memory_space<smem>>
    %8 = vector.broadcast %7 : f32 to vector<2x128xf32>
    %9 = arith.mulf %6, %8 : vector<2x128xf32>
    %10 = arith.addf %4, %9 : vector<2x128xf32>
    %c0_10 = arith.constant 0 : index
    %c2 = arith.constant 2 : index
    %c0_11 = arith.constant 0 : index
    %c0_12 = arith.constant 0 : index
    %11 = vector.load %arg2[%c0_10, %c2, %c0_11, %c0_12] : memref<2x4x2x128xf32, #tpu.memory_space<vmem>>, vector<1x1x2x128xf32>
    %12 = vector.shape_cast %11 : vector<1x1x2x128xf32> to vector<2x128xf32>
    %c0_13 = arith.constant 0 : index
    %c2_14 = arith.constant 2 : index
    %13 = memref.load %arg3[%c0_13, %c2_14] : memref<2x4xf32, #tpu.memory_space<smem>>
    %14 = vector.broadcast %13 : f32 to vector<2x128xf32>
    %15 = arith.mulf %12, %14 : vector<2x128xf32>
    %16 = arith.addf %10, %15 : vector<2x128xf32>
    %c0_15 = arith.constant 0 : index
    %c3 = arith.constant 3 : index
    %c0_16 = arith.constant 0 : index
    %c0_17 = arith.constant 0 : index
    %17 = vector.load %arg2[%c0_15, %c3, %c0_16, %c0_17] : memref<2x4x2x128xf32, #tpu.memory_space<vmem>>, vector<1x1x2x128xf32>
    %18 = vector.shape_cast %17 : vector<1x1x2x128xf32> to vector<2x128xf32>
    %c0_18 = arith.constant 0 : index
    %c3_19 = arith.constant 3 : index
    %19 = memref.load %arg3[%c0_18, %c3_19] : memref<2x4xf32, #tpu.memory_space<smem>>
    %20 = vector.broadcast %19 : f32 to vector<2x128xf32>
    %21 = arith.mulf %18, %20 : vector<2x128xf32>
    %22 = arith.addf %16, %21 : vector<2x128xf32>
    %c0_20 = arith.constant 0 : index
    %23 = memref.load %arg4[%c0_20] : memref<2xf32, #tpu.memory_space<smem>>
    %24 = vector.broadcast %23 : f32 to vector<2x128xf32>
    %25 = arith.addf %22, %24 : vector<2x128xf32>
    %c0_21 = arith.constant 0 : index
    %c0_22 = arith.constant 0 : index
    %c0_23 = arith.constant 0 : index
    %c0_24 = arith.constant 0 : index
    %26 = vector.load %arg5[%c0_21, %c0_22, %c0_23, %c0_24] : memref<2x2x2x128xf32, #tpu.memory_space<vmem>>, vector<1x1x2x128xf32>
    %27 = vector.shape_cast %26 : vector<1x1x2x128xf32> to vector<2x128xf32>
    %28 = vector.shape_cast %25 : vector<2x128xf32> to vector<1x1x2x128xf32>
    tpu.vector_store %arg5[%c0_21, %c0_22, %c0_23, %c0_24], %28 {strides = array<i32>} : memref<2x2x2x128xf32, #tpu.memory_space<vmem>>, vector<1x1x2x128xf32>,
    %c0_25 = arith.constant 0 : index
    %c0_26 = arith.constant 0 : index
    %c0_27 = arith.constant 0 : index
    %c0_28 = arith.constant 0 : index
    %29 = vector.load %arg2[%c0_25, %c0_26, %c0_27, %c0_28] : memref<2x4x2x128xf32, #tpu.memory_space<vmem>>, vector<1x1x2x128xf32>
    %30 = vector.shape_cast %29 : vector<1x1x2x128xf32> to vector<2x128xf32>
    %c1_29 = arith.constant 1 : index
    %c0_30 = arith.constant 0 : index
    %31 = memref.load %arg3[%c1_29, %c0_30] : memref<2x4xf32, #tpu.memory_space<smem>>
    %32 = vector.broadcast %31 : f32 to vector<2x128xf32>
    %33 = arith.mulf %30, %32 : vector<2x128xf32>
    %c0_31 = arith.constant 0 : index
    %c1_32 = arith.constant 1 : index
    %c0_33 = arith.constant 0 : index
    %c0_34 = arith.constant 0 : index
    %34 = vector.load %arg2[%c0_31, %c1_32, %c0_33, %c0_34] : memref<2x4x2x128xf32, #tpu.memory_space<vmem>>, vector<1x1x2x128xf32>
    %35 = vector.shape_cast %34 : vector<1x1x2x128xf32> to vector<2x128xf32>
    %c1_35 = arith.constant 1 : index
    %c1_36 = arith.constant 1 : index
    %36 = memref.load %arg3[%c1_35, %c1_36] : memref<2x4xf32, #tpu.memory_space<smem>>
    %37 = vector.broadcast %36 : f32 to vector<2x128xf32>
    %38 = arith.mulf %35, %37 : vector<2x128xf32>
    %39 = arith.addf %33, %38 : vector<2x128xf32>
    %c0_37 = arith.constant 0 : index
    %c2_38 = arith.constant 2 : index
    %c0_39 = arith.constant 0 : index
    %c0_40 = arith.constant 0 : index
    %40 = vector.load %arg2[%c0_37, %c2_38, %c0_39, %c0_40] : memref<2x4x2x128xf32, #tpu.memory_space<vmem>>, vector<1x1x2x128xf32>
    %41 = vector.shape_cast %40 : vector<1x1x2x128xf32> to vector<2x128xf32>
    %c1_41 = arith.constant 1 : index
    %c2_42 = arith.constant 2 : index
    %42 = memref.load %arg3[%c1_41, %c2_42] : memref<2x4xf32, #tpu.memory_space<smem>>
    %43 = vector.broadcast %42 : f32 to vector<2x128xf32>
    %44 = arith.mulf %41, %43 : vector<2x128xf32>
    %45 = arith.addf %39, %44 : vector<2x128xf32>
    %c0_43 = arith.constant 0 : index
    %c3_44 = arith.constant 3 : index
    %c0_45 = arith.constant 0 : index
    %c0_46 = arith.constant 0 : index
    %46 = vector.load %arg2[%c0_43, %c3_44, %c0_45, %c0_46] : memref<2x4x2x128xf32, #tpu.memory_space<vmem>>, vector<1x1x2x128xf32>
    %47 = vector.shape_cast %46 : vector<1x1x2x128xf32> to vector<2x128xf32>
    %c1_47 = arith.constant 1 : index
    %c3_48 = arith.constant 3 : index
    %48 = memref.load %arg3[%c1_47, %c3_48] : memref<2x4xf32, #tpu.memory_space<smem>>
    %49 = vector.broadcast %48 : f32 to vector<2x128xf32>
    %50 = arith.mulf %47, %49 : vector<2x128xf32>
    %51 = arith.addf %45, %50 : vector<2x128xf32>
    %c1_49 = arith.constant 1 : index
    %52 = memref.load %arg4[%c1_49] : memref<2xf32, #tpu.memory_space<smem>>
    %53 = vector.broadcast %52 : f32 to vector<2x128xf32>
    %54 = arith.addf %51, %53 : vector<2x128xf32>
    %c0_50 = arith.constant 0 : index
    %c1_51 = arith.constant 1 : index
    %c0_52 = arith.constant 0 : index
    %c0_53 = arith.constant 0 : index
    %55 = vector.load %arg5[%c0_50, %c1_51, %c0_52, %c0_53] : memref<2x2x2x128xf32, #tpu.memory_space<vmem>>, vector<1x1x2x128xf32>
    %56 = vector.shape_cast %55 : vector<1x1x2x128xf32> to vector<2x128xf32>
    %57 = vector.shape_cast %54 : vector<2x128xf32> to vector<1x1x2x128xf32>
    tpu.vector_store %arg5[%c0_50, %c1_51, %c0_52, %c0_53], %57 {strides = array<i32>} : memref<2x2x2x128xf32, #tpu.memory_space<vmem>>, vector<1x1x2x128xf32>,
    %c1_54 = arith.constant 1 : index
    %c0_55 = arith.constant 0 : index
    %c0_56 = arith.constant 0 : index
    %c0_57 = arith.constant 0 : index
    %58 = vector.load %arg2[%c1_54, %c0_55, %c0_56, %c0_57] : memref<2x4x2x128xf32, #tpu.memory_space<vmem>>, vector<1x1x2x128xf32>
    %59 = vector.shape_cast %58 : vector<1x1x2x128xf32> to vector<2x128xf32>
    %c0_58 = arith.constant 0 : index
    %c0_59 = arith.constant 0 : index
    %60 = memref.load %arg3[%c0_58, %c0_59] : memref<2x4xf32, #tpu.memory_space<smem>>
    %61 = vector.broadcast %60 : f32 to vector<2x128xf32>
    %62 = arith.mulf %59, %61 : vector<2x128xf32>
    %c1_60 = arith.constant 1 : index
    %c1_61 = arith.constant 1 : index
    %c0_62 = arith.constant 0 : index
    %c0_63 = arith.constant 0 : index
    %63 = vector.load %arg2[%c1_60, %c1_61, %c0_62, %c0_63] : memref<2x4x2x128xf32, #tpu.memory_space<vmem>>, vector<1x1x2x128xf32>
    %64 = vector.shape_cast %63 : vector<1x1x2x128xf32> to vector<2x128xf32>
    %c0_64 = arith.constant 0 : index
    %c1_65 = arith.constant 1 : index
    %65 = memref.load %arg3[%c0_64, %c1_65] : memref<2x4xf32, #tpu.memory_space<smem>>
    %66 = vector.broadcast %65 : f32 to vector<2x128xf32>
    %67 = arith.mulf %64, %66 : vector<2x128xf32>
    %68 = arith.addf %62, %67 : vector<2x128xf32>
    %c1_66 = arith.constant 1 : index
    %c2_67 = arith.constant 2 : index
    %c0_68 = arith.constant 0 : index
    %c0_69 = arith.constant 0 : index
    %69 = vector.load %arg2[%c1_66, %c2_67, %c0_68, %c0_69] : memref<2x4x2x128xf32, #tpu.memory_space<vmem>>, vector<1x1x2x128xf32>
    %70 = vector.shape_cast %69 : vector<1x1x2x128xf32> to vector<2x128xf32>
    %c0_70 = arith.constant 0 : index
    %c2_71 = arith.constant 2 : index
    %71 = memref.load %arg3[%c0_70, %c2_71] : memref<2x4xf32, #tpu.memory_space<smem>>
    %72 = vector.broadcast %71 : f32 to vector<2x128xf32>
    %73 = arith.mulf %70, %72 : vector<2x128xf32>
    %74 = arith.addf %68, %73 : vector<2x128xf32>
    %c1_72 = arith.constant 1 : index
    %c3_73 = arith.constant 3 : index
    %c0_74 = arith.constant 0 : index
    %c0_75 = arith.constant 0 : index
    %75 = vector.load %arg2[%c1_72, %c3_73, %c0_74, %c0_75] : memref<2x4x2x128xf32, #tpu.memory_space<vmem>>, vector<1x1x2x128xf32>
    %76 = vector.shape_cast %75 : vector<1x1x2x128xf32> to vector<2x128xf32>
    %c0_76 = arith.constant 0 : index
    %c3_77 = arith.constant 3 : index
    %77 = memref.load %arg3[%c0_76, %c3_77] : memref<2x4xf32, #tpu.memory_space<smem>>
    %78 = vector.broadcast %77 : f32 to vector<2x128xf32>
    %79 = arith.mulf %76, %78 : vector<2x128xf32>
    %80 = arith.addf %74, %79 : vector<2x128xf32>
    %c0_78 = arith.constant 0 : index
    %81 = memref.load %arg4[%c0_78] : memref<2xf32, #tpu.memory_space<smem>>
    %82 = vector.broadcast %81 : f32 to vector<2x128xf32>
    %83 = arith.addf %80, %82 : vector<2x128xf32>
    %c1_79 = arith.constant 1 : index
    %c0_80 = arith.constant 0 : index
    %c0_81 = arith.constant 0 : index
    %c0_82 = arith.constant 0 : index
    %84 = vector.load %arg5[%c1_79, %c0_80, %c0_81, %c0_82] : memref<2x2x2x128xf32, #tpu.memory_space<vmem>>, vector<1x1x2x128xf32>
    %85 = vector.shape_cast %84 : vector<1x1x2x128xf32> to vector<2x128xf32>
    %86 = vector.shape_cast %83 : vector<2x128xf32> to vector<1x1x2x128xf32>
    tpu.vector_store %arg5[%c1_79, %c0_80, %c0_81, %c0_82], %86 {strides = array<i32>} : memref<2x2x2x128xf32, #tpu.memory_space<vmem>>, vector<1x1x2x128xf32>,
    %c1_83 = arith.constant 1 : index
    %c0_84 = arith.constant 0 : index
    %c0_85 = arith.constant 0 : index
    %c0_86 = arith.constant 0 : index
    %87 = vector.load %arg2[%c1_83, %c0_84, %c0_85, %c0_86] : memref<2x4x2x128xf32, #tpu.memory_space<vmem>>, vector<1x1x2x128xf32>
    %88 = vector.shape_cast %87 : vector<1x1x2x128xf32> to vector<2x128xf32>
    %c1_87 = arith.constant 1 : index
    %c0_88 = arith.constant 0 : index
    %89 = memref.load %arg3[%c1_87, %c0_88] : memref<2x4xf32, #tpu.memory_space<smem>>
    %90 = vector.broadcast %89 : f32 to vector<2x128xf32>
    %91 = arith.mulf %88, %90 : vector<2x128xf32>
    %c1_89 = arith.constant 1 : index
    %c1_90 = arith.constant 1 : index
    %c0_91 = arith.constant 0 : index
    %c0_92 = arith.constant 0 : index
    %92 = vector.load %arg2[%c1_89, %c1_90, %c0_91, %c0_92] : memref<2x4x2x128xf32, #tpu.memory_space<vmem>>, vector<1x1x2x128xf32>
    %93 = vector.shape_cast %92 : vector<1x1x2x128xf32> to vector<2x128xf32>
    %c1_93 = arith.constant 1 : index
    %c1_94 = arith.constant 1 : index
    %94 = memref.load %arg3[%c1_93, %c1_94] : memref<2x4xf32, #tpu.memory_space<smem>>
    %95 = vector.broadcast %94 : f32 to vector<2x128xf32>
    %96 = arith.mulf %93, %95 : vector<2x128xf32>
    %97 = arith.addf %91, %96 : vector<2x128xf32>
    %c1_95 = arith.constant 1 : index
    %c2_96 = arith.constant 2 : index
    %c0_97 = arith.constant 0 : index
    %c0_98 = arith.constant 0 : index
    %98 = vector.load %arg2[%c1_95, %c2_96, %c0_97, %c0_98] : memref<2x4x2x128xf32, #tpu.memory_space<vmem>>, vector<1x1x2x128xf32>
    %99 = vector.shape_cast %98 : vector<1x1x2x128xf32> to vector<2x128xf32>
    %c1_99 = arith.constant 1 : index
    %c2_100 = arith.constant 2 : index
    %100 = memref.load %arg3[%c1_99, %c2_100] : memref<2x4xf32, #tpu.memory_space<smem>>
    %101 = vector.broadcast %100 : f32 to vector<2x128xf32>
    %102 = arith.mulf %99, %101 : vector<2x128xf32>
    %103 = arith.addf %97, %102 : vector<2x128xf32>
    %c1_101 = arith.constant 1 : index
    %c3_102 = arith.constant 3 : index
    %c0_103 = arith.constant 0 : index
    %c0_104 = arith.constant 0 : index
    %104 = vector.load %arg2[%c1_101, %c3_102, %c0_103, %c0_104] : memref<2x4x2x128xf32, #tpu.memory_space<vmem>>, vector<1x1x2x128xf32>
    %105 = vector.shape_cast %104 : vector<1x1x2x128xf32> to vector<2x128xf32>
    %c1_105 = arith.constant 1 : index
    %c3_106 = arith.constant 3 : index
    %106 = memref.load %arg3[%c1_105, %c3_106] : memref<2x4xf32, #tpu.memory_space<smem>>
    %107 = vector.broadcast %106 : f32 to vector<2x128xf32>
    %108 = arith.mulf %105, %107 : vector<2x128xf32>
    %109 = arith.addf %103, %108 : vector<2x128xf32>
    %c1_107 = arith.constant 1 : index
    %110 = memref.load %arg4[%c1_107] : memref<2xf32, #tpu.memory_space<smem>>
    %111 = vector.broadcast %110 : f32 to vector<2x128xf32>
    %112 = arith.addf %109, %111 : vector<2x128xf32>
    %c1_108 = arith.constant 1 : index
    %c1_109 = arith.constant 1 : index
    %c0_110 = arith.constant 0 : index
    %c0_111 = arith.constant 0 : index
    %113 = vector.load %arg5[%c1_108, %c1_109, %c0_110, %c0_111] : memref<2x2x2x128xf32, #tpu.memory_space<vmem>>, vector<1x1x2x128xf32>
    %114 = vector.shape_cast %113 : vector<1x1x2x128xf32> to vector<2x128xf32>
    %115 = vector.shape_cast %112 : vector<2x128xf32> to vector<1x1x2x128xf32>
    tpu.vector_store %arg5[%c1_108, %c1_109, %c0_110, %c0_111], %115 {strides = array<i32>} : memref<2x2x2x128xf32, #tpu.memory_space<vmem>>, vector<1x1x2x128xf32>,
    return
  }
  func.func @transform_0(%arg0: i32, %arg1: i32) -> (i32, i32, i32, i32) {
    %c0_i32 = arith.constant 0 : i32
    %c0_i32_0 = arith.constant 0 : i32
    %c0_i32_1 = arith.constant 0 : i32
    return %arg0, %c0_i32, %arg1, %c0_i32_0 : i32, i32, i32, i32
  }
  func.func @transform_1(%arg0: i32, %arg1: i32) -> (i32, i32) {
    %c0_i32 = arith.constant 0 : i32
    %c0_i32_0 = arith.constant 0 : i32
    %c0_i32_1 = arith.constant 0 : i32
    return %c0_i32, %c0_i32_0 : i32, i32
  }
  func.func @transform_2(%arg0: i32, %arg1: i32) -> i32 {
    %c0_i32 = arith.constant 0 : i32
    %c0_i32_0 = arith.constant 0 : i32
    return %c0_i32 : i32
  }
  func.func @transform_3(%arg0: i32, %arg1: i32) -> (i32, i32, i32, i32) {
    %c0_i32 = arith.constant 0 : i32
    %c0_i32_0 = arith.constant 0 : i32
    %c0_i32_1 = arith.constant 0 : i32
    return %arg0, %c0_i32, %arg1, %c0_i32_0 : i32, i32, i32, i32
  }
}

</mosaic_0001>

<llo_original>
// kernel: tpu_custom_call.1
$region0: #{tpu_custom_call.1}
  #allocation0 [shape = 'u32[]', space=smem, size = 0x4, offset = 0x4, fixed_abs, tag = 'smem constant byte address 0x4 - core index']
  #allocation1 [shape = 'u32[144,128]{1,0:T(1,128)}', space=vmem, size = 0x12000, scoped, tag = 'internal scratch']
  %s0 = inlined_call_operand.hbm [shape: f32[2,4,2,128], index: 0, kind: input, shape index: {}]
  %s1 = inlined_call_operand.hbm [shape: f32[2,4], index: 1, kind: input, shape index: {}]
  %s2 = inlined_call_operand.vmem [shape: f32[2], index: 2, kind: input, shape index: {}]
  %s3 = inlined_call_operand.hbm [shape: f32[2,2,2,128], index: 3, kind: output, shape index: {}]
  %s4 = sld [smem:[#allocation0]]
  $region34: #{tpu_custom_call.1} parent=0
    _
  %s6 = ssub.s32 1, %s4
  %s7 = scalar_select 0, %s6, %s4
  $region1: #{tpu_custom_call.1} parent=0
    #allocation2 [shape = 'u8[8192]{0}', space=vmem, size = 0x2000, scoped, tag = 'input window, operand 0, single buffered']
    #allocation3 [shape = 's32[1]{0}', space=sflag, size = 0x4, scoped, tag = 'scoped memory for tpu_custom_call.1']
    #allocation4 [shape = 's32[1]{0}', space=sflag, size = 0x4, scoped, tag = 'scoped memory for tpu_custom_call.1']
    #allocation5 [shape = 's32[1]{0}', space=sflag, size = 0x4, scoped, tag = 'scoped memory for tpu_custom_call.1']
    #allocation6 [shape = 's32[1]{0}', space=sflag, size = 0x4, scoped, tag = 'scoped memory for tpu_custom_call.1']
    #allocation7 [shape = 'u8[1024]{0}', space=smem, size = 0x400, scoped, tag = 'input window, operand 1, single buffered']
    #allocation8 [shape = 'u8[512]{0}', space=smem, size = 0x200, scoped, tag = 'input window, operand 2, single buffered']
    #allocation9 [shape = 'u8[4096]{0}', space=vmem, size = 0x1000, scoped, tag = 'output window, operand 0, single buffered']
    %8 = vsyncpa [#allocation3], 0
    %9 = vsyncpa [#allocation5], 0
    %10 = vsyncpa [#allocation6], 0
    %11 = vsyncpa [#allocation4], 0
    // Predicated region
    $region2: #{tpu_custom_call.1} parent=1 // pred_check
      _
    $region3: #{tpu_custom_call.1} parent=1 // pred_check_branch
      %13 = sbr.rel (0) target = $region5
    $region4: #{tpu_custom_call.1} parent=1 // pred_region
      %s15 = ssub.s32 256, 256
      %16 = vsyncadd [#allocation3], %s15
      %s17 = sshll.u32 [#allocation2], 4
      %s18 = int_to_ptr.vmem [resolvable:$true] %s17
      %23 = dma.hbm_to_vmem [thread:$0]  %s0, 256, %s18, [#allocation3], 32, 32, 2
    $region5: #{tpu_custom_call.1} parent=1 // pred_fallthru
      _
    // Predicated region
    $region6: #{tpu_custom_call.1} parent=1 // pred_check
      _
    $region7: #{tpu_custom_call.1} parent=1 // pred_check_branch
      %25 = sbr.rel (0) target = $region9
    $region8: #{tpu_custom_call.1} parent=1 // pred_region
      %s27 = ssub.s32 32, 32
      %28 = vsyncadd [#allocation5], %s27
      %31 = dma.hbm_to_smem %s1, 32, [#allocation7], [#allocation5]
    $region9: #{tpu_custom_call.1} parent=1 // pred_fallthru
      _
    // Predicated region
    $region10: #{tpu_custom_call.1} parent=1 // pred_check
      _
    $region11: #{tpu_custom_call.1} parent=1 // pred_check_branch
      %33 = sbr.rel (0) target = $region13
    $region12: #{tpu_custom_call.1} parent=1 // pred_region
      %s35 = ssub.s32 16, 16
      %36 = vsyncadd [#allocation6], %s35
      %s38 = sshll.u32 %s2, 4
      %s39 = int_to_ptr.vmem [resolvable:$true] %s38
      %41 = dma.vmem_to_smem %s39, 16, [#allocation8], [#allocation6]
    $region13: #{tpu_custom_call.1} parent=1 // pred_fallthru
      _
    // Predicated region
    $region14: #{tpu_custom_call.1} parent=1 // pred_check
      _
    $region15: #{tpu_custom_call.1} parent=1 // pred_check_branch
      %43 = sbr.rel (0) target = $region17
    $region16: #{tpu_custom_call.1} parent=1 // pred_region
      %44 = dma.done [#allocation3], 256
    $region17: #{tpu_custom_call.1} parent=1 // pred_fallthru
      _
    // Predicated region
    $region18: #{tpu_custom_call.1} parent=1 // pred_check
      _
    $region19: #{tpu_custom_call.1} parent=1 // pred_check_branch
      %46 = sbr.rel (0) target = $region21
    $region20: #{tpu_custom_call.1} parent=1 // pred_region
      %47 = dma.done [#allocation5], 32
    $region21: #{tpu_custom_call.1} parent=1 // pred_fallthru
      _
    // Predicated region
    $region22: #{tpu_custom_call.1} parent=1 // pred_check
      _
    $region23: #{tpu_custom_call.1} parent=1 // pred_check_branch
      %49 = sbr.rel (0) target = $region25
    $region24: #{tpu_custom_call.1} parent=1 // pred_region
      %50 = dma.done [#allocation6], 16
    $region25: #{tpu_custom_call.1} parent=1 // pred_fallthru
      _
    %51 = sfence
    %v52 = vld [vmem:[#allocation2] sm:$0x3]
    %s53 = sld [smem:[#allocation7]]
    %v54 = vstv %s53
    %v55 = vmul.f32 %v52, %v54
    %s56 = scalar_lea.vmem [#allocation2], 2
    %v57 = vld [vmem:[%s56] sm:$0x3]
    %s58 = sld [smem:[#allocation7 + $0x1]]
    %v59 = vstv %s58
    %v60 = vmul.f32 %v57, %v59
    %v61 = vadd.f32 %v55, %v60
    %s62 = scalar_lea.vmem [#allocation2], 4
    %v63 = vld [vmem:[%s62] sm:$0x3]
    %s64 = sld [smem:[#allocation7 + $0x2]]
    %v65 = vstv %s64
    %v66 = vmul.f32 %v63, %v65
    %v67 = vadd.f32 %v61, %v66
    %s68 = scalar_lea.vmem [#allocation2], 6
    %v69 = vld [vmem:[%s68] sm:$0x3]
    %s70 = sld [smem:[#allocation7 + $0x3]]
    %v71 = vstv %s70
    %v72 = vmul.f32 %v69, %v71
    %v73 = vadd.f32 %v67, %v72
    %s74 = sld [smem:[#allocation8]]
    %v75 = vstv %s74
    %v76 = vadd.f32 %v73, %v75
    %77 = vst [vmem:[#allocation9] sm:$0x3] %v76
    %v78 = vld [vmem:[#allocation2] sm:$0x3]
    %s79 = sld [smem:[#allocation7 + $0x80]]
    %v80 = vstv %s79
    %v81 = vmul.f32 %v78, %v80
    %v82 = vld [vmem:[%s56] sm:$0x3]
    %s83 = sld [smem:[#allocation7 + $0x81]]
    %v84 = vstv %s83
    %v85 = vmul.f32 %v82, %v84
    %v86 = vadd.f32 %v81, %v85
    %v87 = vld [vmem:[%s62] sm:$0x3]
    %s88 = sld [smem:[#allocation7 + $0x82]]
    %v89 = vstv %s88
    %v90 = vmul.f32 %v87, %v89
    %v91 = vadd.f32 %v86, %v90
    %v92 = vld [vmem:[%s68] sm:$0x3]
    %s93 = sld [smem:[#allocation7 + $0x83]]
    %v94 = vstv %s93
    %v95 = vmul.f32 %v92, %v94
    %v96 = vadd.f32 %v91, %v95
    %s97 = sld [smem:[#allocation8 + $0x1]]
    %v98 = vstv %s97
    %v99 = vadd.f32 %v96, %v98
    %s100 = scalar_lea.vmem [#allocation9], 2
    %101 = vst [vmem:[%s100] sm:$0x3] %v99
    %s102 = scalar_lea.vmem [#allocation2], 8
    %v103 = vld [vmem:[%s102] sm:$0x3]
    %s104 = sld [smem:[#allocation7]]
    %v105 = vstv %s104
    %v106 = vmul.f32 %v103, %v105
    %s107 = scalar_lea.vmem [#allocation2], 10
    %v108 = vld [vmem:[%s107] sm:$0x3]
    %s109 = sld [smem:[#allocation7 + $0x1]]
    %v110 = vstv %s109
    %v111 = vmul.f32 %v108, %v110
    %v112 = vadd.f32 %v106, %v111
    %s113 = scalar_lea.vmem [#allocation2], 12
    %v114 = vld [vmem:[%s113] sm:$0x3]
    %s115 = sld [smem:[#allocation7 + $0x2]]
    %v116 = vstv %s115
    %v117 = vmul.f32 %v114, %v116
    %v118 = vadd.f32 %v112, %v117
    %s119 = scalar_lea.vmem [#allocation2], 14
    %v120 = vld [vmem:[%s119] sm:$0x3]
    %s121 = sld [smem:[#allocation7 + $0x3]]
    %v122 = vstv %s121
    %v123 = vmul.f32 %v120, %v122
    %v124 = vadd.f32 %v118, %v123
    %s125 = sld [smem:[#allocation8]]
    %v126 = vstv %s125
    %v127 = vadd.f32 %v124, %v126
    %s128 = scalar_lea.vmem [#allocation9], 4
    %129 = vst [vmem:[%s128] sm:$0x3] %v127
    %v130 = vld [vmem:[%s102] sm:$0x3]
    %s131 = sld [smem:[#allocation7 + $0x80]]
    %v132 = vstv %s131
    %v133 = vmul.f32 %v130, %v132
    %v134 = vld [vmem:[%s107] sm:$0x3]
    %s135 = sld [smem:[#allocation7 + $0x81]]
    %v136 = vstv %s135
    %v137 = vmul.f32 %v134, %v136
    %v138 = vadd.f32 %v133, %v137
    %v139 = vld [vmem:[%s113] sm:$0x3]
    %s140 = sld [smem:[#allocation7 + $0x82]]
    %v141 = vstv %s140
    %v142 = vmul.f32 %v139, %v141
    %v143 = vadd.f32 %v138, %v142
    %v144 = vld [vmem:[%s119] sm:$0x3]
    %s145 = sld [smem:[#allocation7 + $0x83]]
    %v146 = vstv %s145
    %v147 = vmul.f32 %v144, %v146
    %v148 = vadd.f32 %v143, %v147
    %s149 = sld [smem:[#allocation8 + $0x1]]
    %v150 = vstv %s149
    %v151 = vadd.f32 %v148, %v150
    %s152 = scalar_lea.vmem [#allocation9], 6
    %153 = vst [vmem:[%s152] sm:$0x3] %v151
    // Predicated region
    $region26: #{tpu_custom_call.1} parent=1 // pred_check
      _
    $region27: #{tpu_custom_call.1} parent=1 // pred_check_branch
      %155 = sbr.rel (0) target = $region29
    $region28: #{tpu_custom_call.1} parent=1 // pred_region
      %s157 = ssub.s32 128, 128
      %158 = vsyncadd [#allocation4], %s157
      %s159 = sshll.u32 [#allocation9], 4
      %s160 = int_to_ptr.vmem [resolvable:$true] %s159
      %165 = dma.vmem_to_hbm [thread:$0]  %s160, 128, %s3, [#allocation4], 32, 32, 2
    $region29: #{tpu_custom_call.1} parent=1 // pred_fallthru
      _
    // Predicated region
    $region30: #{tpu_custom_call.1} parent=1 // pred_check
      _
    $region31: #{tpu_custom_call.1} parent=1 // pred_check_branch
      %167 = sbr.rel (0) target = $region33
    $region32: #{tpu_custom_call.1} parent=1 // pred_region
      %168 = dma.done [#allocation4], 128
    $region33: #{tpu_custom_call.1} parent=1 // pred_fallthru
      _
    %169 = vsyncpa [#allocation3], 1
    %170 = vsyncpa [#allocation4], 1
    %171 = vsyncpa [#allocation5], 1
    %172 = vsyncpa [#allocation6], 1

</llo_original>
